<compile_context>
chip_gen: v6e
topology: v6e:2x2x1
jax: 0.10.0
libtpu: 0.0.40
codegen_flags: <defaults>
</compile_context>

<pallas_src>
import jax
import jax.numpy as jnp
from jax import lax
from jax.experimental import pallas as pl
from jax.experimental.pallas import tpu as pltpu

_COLS = 1024            # lane-dense width (multiple of 128) -> wide, unmasked vst rows
_TILE_R_DEFAULT = 512   # 512 x 1024 x 4 B = 2 MiB/buffer; ~8 MiB live with double-buffering
                        # (fits v7x's smaller VMEM with big headroom)

# lowbias32-style mixing constants (uint32).
_MIX_A = 0x9E3779B9
_MIX_B = 0x7FEB352D
_MIX_C = 0x846CA68B


def _binarize01_kernel_t0(x_ref, o_ref):
    """T == 0 fast path: out = (x >= 0).astype(dtype); random term is provably zero."""
    x = x_ref[...]
    o_ref[...] = (x >= jnp.asarray(0, x.dtype)).astype(x.dtype)


def _make_binarize01_kernel_rand(T: float, tile_r: int, cols: int):
    half_t = float(T) / 2.0

    def kernel(seed_ref, x_ref, o_ref):
        x = x_ref[...]
        ht = jnp.asarray(half_t, x.dtype)

        # Global element index -> unique counter per element (decorrelated per tile).
        row = lax.broadcasted_iota(jnp.int32, (tile_r, cols), 0)
        col = lax.broadcasted_iota(jnp.int32, (tile_r, cols), 1)
        base_row = pl.program_id(0) * tile_r
        idx = ((base_row + row) * cols + col).astype(jnp.uint32)

        # Counter-based uint32 hash of (index, seed); low bit ~ uniform {0, 1}.
        h = idx + seed_ref[0].astype(jnp.uint32) * jnp.uint32(_MIX_A)
        h = h ^ (h >> 16)
        h = h * jnp.uint32(_MIX_B)
        h = h ^ (h >> 15)
        h = h * jnp.uint32(_MIX_C)
        h = h ^ (h >> 16)
        random = (h & jnp.uint32(1)).astype(jnp.int32).astype(x.dtype)

        one = jnp.asarray(1, x.dtype)
        zero = jnp.asarray(0, x.dtype)
        # out = 1 where x >= T/2 ; random in the dead zone [-T/2, T/2) ; 0 below.
        o_ref[...] = jnp.where(x >= ht, one, jnp.where(x >= -ht, random, zero))

    return kernel


def binarize01_act(x, T: float = 0.0, seed: int = 0):
    """Forward pass of Binarize01Act. Any shape/dtype; returns same shape/dtype."""
    orig_shape = x.shape
    total = int(x.size)
    dtype = x.dtype

    # Sub-32-bit dtypes pack along sublanes: round rows to the matching multiple.
    itemsize = jnp.dtype(dtype).itemsize
    sublane = 8 * max(1, 4 // itemsize)   # 8 for f32, 16 for bf16, 32 for int8

    cols = _COLS
    rows = pl.cdiv(total, cols)
    rows_padded = pl.cdiv(rows, sublane) * sublane
    padded_total = rows_padded * cols

    x_flat = jnp.ravel(x)
    if padded_total != total:
        # TODO(synk): for large ragged inputs, handle the tail outside the kernel
        # instead of padding the whole flat array (pad/slice = extra HBM round trip).
        x_flat = jnp.pad(x_flat, (0, padded_total - total))
    x2d = x_flat.reshape(rows_padded, cols)

    tile_r = min(_TILE_R_DEFAULT, rows_padded)
    grid = (pl.cdiv(rows_padded, tile_r),)

    compiler_params = pltpu.CompilerParams(
        dimension_semantics=("parallel",),        # shard grid across TCs (v7x megacore)
        vmem_limit_bytes=32 * 1024 * 1024,        # explicit, safe on v7x's 64 MiB VMEM
    )

    block = pl.BlockSpec((tile_r, cols), lambda i: (i, 0))
    out_shape = jax.ShapeDtypeStruct((rows_padded, cols), dtype)

    if float(T) == 0.0:
        out2d = pl.pallas_call(
            _binarize01_kernel_t0,
            out_shape=out_shape,
            grid=grid,
            in_specs=[block],
            out_specs=block,
            compiler_params=compiler_params,
        )(x2d)
    else:
        seed_arr = jnp.asarray([seed], dtype=jnp.int32)
        kernel = _make_binarize01_kernel_rand(float(T), tile_r, cols)
        out2d = pl.pallas_call(
            kernel,
            out_shape=out_shape,
            grid=grid,
            in_specs=[
                pl.BlockSpec(memory_space=pltpu.MemorySpace.SMEM),  # seed scalar
                block,
            ],
            out_specs=block,
            compiler_params=compiler_params,
        )(seed_arr, x2d)

    if padded_total != total:
        out = out2d.reshape(-1)[:total].reshape(orig_shape)
    else:
        out = out2d.reshape(orig_shape)
    return out


if __name__ == "__main__":
    key = jax.random.PRNGKey(0)
    # NCHW input, small shape consistent with a conv-style activation.
    x = jax.random.normal(key, (2, 4, 16, 16), dtype=jnp.float32)

    # Default module config: T=0, so output is exactly (x >= 0).astype(f32).
    out = jax.block_until_ready(binarize01_act(x, T=0.0, seed=0))
    ref = (x >= 0.0).astype(jnp.float32)
    assert out.shape == x.shape and out.dtype == x.dtype
    assert bool(jnp.all(out == ref))

    # Also exercise the nonzero-T (random dead-zone) path once.
    out_t = jax.block_until_ready(binarize01_act(x, T=1.0, seed=123))
    # Values outside the dead zone must be deterministic; inside must be 0 or 1.
    outside_hi = x >= 0.5
    outside_lo = x < -0.5
    assert bool(jnp.all(jnp.where(outside_hi, out_t == 1.0, True)))
    assert bool(jnp.all(jnp.where(outside_lo, out_t == 0.0, True)))
    assert bool(jnp.all((out_t == 0.0) | (out_t == 1.0)))

    print("KERNEL_OK")
</pallas_src>

<mosaic_0001>
module attributes {stable_mosaic.version = 11 : i64} {
  func.func @_binarize01_kernel_t0(%arg0: i32, %arg1: memref<8x1024xf32, #tpu.memory_space<vmem>>, %arg2: memref<8x1024xf32, #tpu.memory_space<vmem>>) attributes {dimension_semantics = [#tpu.dimension_semantics<parallel>], iteration_bounds = array<i64: 1>, scalar_prefetch = 0 : i64, scratch_operands = 0 : i64, tpu.core_type = #tpu.core_type<tc>, window_params = [{transform_indices = @transform_0, window_bounds = array<i64: 8, 1024>}, {transform_indices = @transform_1, window_bounds = array<i64: 8, 1024>}]} {
    %c0 = arith.constant 0 : index
    %c0_0 = arith.constant 0 : index
    %0 = vector.load %arg1[%c0, %c0_0] : memref<8x1024xf32, #tpu.memory_space<vmem>>, vector<8x1024xf32>
    %cst = arith.constant 0.000000e+00 : f32
    %1 = vector.broadcast %cst : f32 to vector<8x1024xf32>
    %2 = arith.cmpf oge, %0, %1 : vector<8x1024xf32>
    %3 = arith.extui %2 : vector<8x1024xi1> to vector<8x1024xi32>
    %4 = arith.sitofp %3 : vector<8x1024xi32> to vector<8x1024xf32>
    %c0_1 = arith.constant 0 : index
    %c0_2 = arith.constant 0 : index
    %5 = vector.load %arg2[%c0_1, %c0_2] : memref<8x1024xf32, #tpu.memory_space<vmem>>, vector<8x1024xf32>
    tpu.vector_store %arg2[%c0_1, %c0_2], %4 {strides = array<i32>} : memref<8x1024xf32, #tpu.memory_space<vmem>>, vector<8x1024xf32>,
    return
  }
  func.func @transform_0(%arg0: i32) -> (i32, i32) {
    %c0_i32 = arith.constant 0 : i32
    %c0_i32_0 = arith.constant 0 : i32
    return %arg0, %c0_i32 : i32, i32
  }
  func.func @transform_1(%arg0: i32) -> (i32, i32) {
    %c0_i32 = arith.constant 0 : i32
    %c0_i32_0 = arith.constant 0 : i32
    return %arg0, %c0_i32 : i32, i32
  }
}

</mosaic_0001>

<llo_original>
// kernel: tpu_custom_call.1
$region0: #{tpu_custom_call.1}
  #allocation0 [shape = 'u32[]', space=smem, size = 0x4, offset = 0x4, fixed_abs, tag = 'smem constant byte address 0x4 - core index']
  #allocation1 [shape = 'u32[144,128]{1,0:T(1,128)}', space=vmem, size = 0x12000, scoped, tag = 'internal scratch']
  %s0 = inlined_call_operand.hbm [shape: f32[8,1024], index: 0, kind: input, shape index: {}]
  %s1 = inlined_call_operand.hbm [shape: f32[8,1024], index: 1, kind: output, shape index: {}]
  %s2 = sld [smem:[#allocation0]]
  $region18: #{tpu_custom_call.1} parent=0
    _
  %s4 = ssub.s32 1, %s2
  %s5 = scalar_select 0, %s4, %s2
  $region1: #{tpu_custom_call.1} parent=0
    #allocation2 [shape = 'u8[32768]{0}', space=vmem, size = 0x8000, scoped, tag = 'input window, operand 0, single buffered']
    #allocation3 [shape = 's32[1]{0}', space=sflag, size = 0x4, scoped, tag = 'scoped memory for tpu_custom_call.1']
    #allocation4 [shape = 's32[1]{0}', space=sflag, size = 0x4, scoped, tag = 'scoped memory for tpu_custom_call.1']
    #allocation5 [shape = 'u8[32768]{0}', space=vmem, size = 0x8000, scoped, tag = 'output window, operand 0, single buffered']
    %6 = vsyncpa [#allocation3], 0
    %7 = vsyncpa [#allocation4], 0
    // Predicated region
    $region2: #{tpu_custom_call.1} parent=1 // pred_check
      _
    $region3: #{tpu_custom_call.1} parent=1 // pred_check_branch
      %9 = sbr.rel (0) target = $region5
    $region4: #{tpu_custom_call.1} parent=1 // pred_region
      %s11 = ssub.s32 1024, 1024
      %12 = vsyncadd [#allocation3], %s11
      %s14 = sshll.u32 [#allocation2], 4
      %s15 = int_to_ptr.vmem [resolvable:$true] %s14
      %17 = dma.hbm_to_vmem [thread:$0]  %s0, 1024, %s15, [#allocation3]
    $region5: #{tpu_custom_call.1} parent=1 // pred_fallthru
      _
    // Predicated region
    $region6: #{tpu_custom_call.1} parent=1 // pred_check
      _
    $region7: #{tpu_custom_call.1} parent=1 // pred_check_branch
      %19 = sbr.rel (0) target = $region9
    $region8: #{tpu_custom_call.1} parent=1 // pred_region
      %20 = dma.done [#allocation3], 1024
    $region9: #{tpu_custom_call.1} parent=1 // pred_fallthru
      _
    %v21 = vld [vmem:[#allocation2] sm:$0xff]
    %v22 = vld [vmem:[#allocation2 + $0x8] sm:$0xff]
    %v23 = vld [vmem:[#allocation2 + $0x10] sm:$0xff]
    %v24 = vld [vmem:[#allocation2 + $0x18] sm:$0xff]
    %v25 = vld [vmem:[#allocation2 + $0x20] sm:$0xff]
    %v26 = vld [vmem:[#allocation2 + $0x28] sm:$0xff]
    %v27 = vld [vmem:[#allocation2 + $0x30] sm:$0xff]
    %v28 = vld [vmem:[#allocation2 + $0x38] sm:$0xff]
    %vm29 = vcmp.ge.f32.partialorder %v21, 0.0
    %vm30 = vcmp.ge.f32.partialorder %v22, 0.0
    %vm31 = vcmp.ge.f32.partialorder %v23, 0.0
    %vm32 = vcmp.ge.f32.partialorder %v24, 0.0
    %vm33 = vcmp.ge.f32.partialorder %v25, 0.0
    %vm34 = vcmp.ge.f32.partialorder %v26, 0.0
    %vm35 = vcmp.ge.f32.partialorder %v27, 0.0
    %vm36 = vcmp.ge.f32.partialorder %v28, 0.0
    %v37 = vsel %vm29, 1, 0
    %v38 = vsel %vm30, 1, 0
    %v39 = vsel %vm31, 1, 0
    %v40 = vsel %vm32, 1, 0
    %v41 = vsel %vm33, 1, 0
    %v42 = vsel %vm34, 1, 0
    %v43 = vsel %vm35, 1, 0
    %v44 = vsel %vm36, 1, 0
    %v45 = vcvt.s32.f32 %v37
    %v46 = vcvt.s32.f32 %v38
    %v47 = vcvt.s32.f32 %v39
    %v48 = vcvt.s32.f32 %v40
    %v49 = vcvt.s32.f32 %v41
    %v50 = vcvt.s32.f32 %v42
    %v51 = vcvt.s32.f32 %v43
    %v52 = vcvt.s32.f32 %v44
    %53 = vst [vmem:[#allocation5] sm:$0xff] %v45
    %54 = vst [vmem:[#allocation5 + $0x8] sm:$0xff] %v46
    %55 = vst [vmem:[#allocation5 + $0x10] sm:$0xff] %v47
    %56 = vst [vmem:[#allocation5 + $0x18] sm:$0xff] %v48
    %57 = vst [vmem:[#allocation5 + $0x20] sm:$0xff] %v49
    %58 = vst [vmem:[#allocation5 + $0x28] sm:$0xff] %v50
    %59 = vst [vmem:[#allocation5 + $0x30] sm:$0xff] %v51
    %60 = vst [vmem:[#allocation5 + $0x38] sm:$0xff] %v52
    // Predicated region
    $region10: #{tpu_custom_call.1} parent=1 // pred_check
      _
    $region11: #{tpu_custom_call.1} parent=1 // pred_check_branch
      %62 = sbr.rel (0) target = $region13
    $region12: #{tpu_custom_call.1} parent=1 // pred_region
      %s64 = ssub.s32 1024, 1024
      %65 = vsyncadd [#allocation4], %s64
      %s67 = sshll.u32 [#allocation5], 4
      %s68 = int_to_ptr.vmem [resolvable:$true] %s67
      %70 = dma.vmem_to_hbm [thread:$0]  %s68, 1024, %s1, [#allocation4]
    $region13: #{tpu_custom_call.1} parent=1 // pred_fallthru
      _
    // Predicated region
    $region14: #{tpu_custom_call.1} parent=1 // pred_check
      _
    $region15: #{tpu_custom_call.1} parent=1 // pred_check_branch
      %72 = sbr.rel (0) target = $region17
    $region16: #{tpu_custom_call.1} parent=1 // pred_region
      %73 = dma.done [#allocation4], 1024
    $region17: #{tpu_custom_call.1} parent=1 // pred_fallthru
      _
    %74 = vsyncpa [#allocation3], 1
    %75 = vsyncpa [#allocation4], 1

</llo_original>
